<compile_context>
chip_gen: v6e
topology: v6e:2x2x1
jax: 0.10.0
libtpu: 0.0.40
codegen_flags: <defaults>
</compile_context>

<pallas_src>
import math
from functools import partial

import jax
import jax.numpy as jnp
from jax import lax
from jax.experimental import pallas as pl
from jax.experimental.pallas import tpu as pltpu


_VMEM_LIMIT_BYTES = 48 * 1024 * 1024   # <= 48 MiB: safe on v7x (64 MiB phys), v5e/v6e (128 MiB)
_MASK_BIAS = -1e9                      # finite large negative (no NaN hazard)


def _pick_tile(dim, target, align):
    """Largest tile <= target that divides `dim` and is `align`-aligned, else full dim."""
    if dim <= target:
        return dim
    t = max((target // align) * align, align)
    while t >= align:
        if dim % t == 0:
            return t
        t -= align
    return dim


def _default_exp_dtype():
    """bf16 exp on chips with a bf16 EUP (v6e/v7x); f32 elsewhere (v5e and older)."""
    try:
        kind = jax.devices()[0].device_kind.lower()
    except Exception:
        return jnp.float32
    if ("v6" in kind) or ("v7" in kind) or ("7x" in kind):
        return jnp.bfloat16
    return jnp.float32


# ----------------------------------------------------------------------------
# Kernel 1: tiled dense linear  y = x @ W + b  (Q/K/V (optionally fused) and
# final projection)
# ----------------------------------------------------------------------------
def _linear_kernel(x_ref, w_ref, b_ref, o_ref, acc_ref):
    @pl.when(pl.program_id(2) == 0)
    def _():
        acc_ref[...] = jnp.zeros_like(acc_ref)

    acc_ref[...] += jnp.dot(
        x_ref[...], w_ref[...], preferred_element_type=jnp.float32
    )

    @pl.when(pl.program_id(2) == pl.num_programs(2) - 1)
    def _():
        o_ref[...] = (acc_ref[...] + b_ref[...].astype(jnp.float32)).astype(o_ref.dtype)


def pallas_linear(x, w, b, out_dtype,
                  tm_target=512, tn_target=512, tk_target=1024):
    """x: (M, Din) bf16, w: (Din, Dout) bf16, b: (Dout,) f32 -> (M, Dout) out_dtype."""
    M, K = x.shape
    N = w.shape[1]
    tm = _pick_tile(M, tm_target, 16)   # 16-aligned for bf16 sublane packing
    tn = _pick_tile(N, tn_target, 128)
    tk = _pick_tile(K, tk_target, 128)
    grid = (M // tm, N // tn, K // tk)
    b2 = b.reshape(1, N).astype(jnp.float32)
    return pl.pallas_call(
        _linear_kernel,
        grid=grid,
        in_specs=[
            pl.BlockSpec((tm, tk), lambda i, j, k: (i, k)),
            pl.BlockSpec((tk, tn), lambda i, j, k: (k, j)),
            pl.BlockSpec((1, tn), lambda i, j, k: (0, j)),
        ],
        out_specs=pl.BlockSpec((tm, tn), lambda i, j, k: (i, j)),
        out_shape=jax.ShapeDtypeStruct((M, N), out_dtype),
        scratch_shapes=[pltpu.VMEM((tm, tn), jnp.float32)],
        compiler_params=pltpu.CompilerParams(
            dimension_semantics=("parallel", "parallel", "arbitrary"),
            vmem_limit_bytes=_VMEM_LIMIT_BYTES,
        ),
    )(x, w, b2)


# ----------------------------------------------------------------------------
# Kernel 2: flash-style attention (online softmax), all heads per grid step.
# Grid: (B, Lq/tq, Lk/tk).  Q/K/V/output blocks are [1, tile, D] (lane-dense),
# mask bias is fetched once per (batch, q-tile, k-tile).
# ----------------------------------------------------------------------------
def _flash_attn_kernel(q_ref, k_ref, v_ref, bias_ref, o_ref,
                       m_ref, l_ref, acc_ref, *, heads, dph, exp_dtype):
    ki = pl.program_id(2)

    @pl.when(ki == 0)
    def _():
        m_ref[...] = jnp.full(m_ref.shape, -jnp.inf, jnp.float32)
        l_ref[...] = jnp.zeros_like(l_ref)
        acc_ref[...] = jnp.zeros_like(acc_ref)

    q = q_ref[0]                                  # (tq, D) bf16 (scale folded into W_q)
    k = k_ref[0]                                  # (tk, D) bf16
    v = v_ref[0]                                  # (tk, D) bf16
    bias = bias_ref[0].astype(jnp.float32)        # (tq, tk) — converted once per step

    # Static per-head loop over lane windows (H is small; unrolled at trace time).
    for h in range(heads):
        lo = h * dph
        hi = lo + dph
        q_h = q[:, lo:hi]                         # (tq, dph)
        k_h = k[:, lo:hi]                         # (tk, dph)
        v_h = v[:, lo:hi]                         # (tk, dph)

        # scores: contract shared last dim directly — no explicit k transpose.
        s = lax.dot_general(q_h, k_h, (((1,), (1,)), ((), ())),
                            preferred_element_type=jnp.float32)   # (tq, tk) f32
        s = s + bias

        m_prev = m_ref[h]                         # (tq, 1)
        m_new = jnp.maximum(m_prev, jnp.max(s, axis=-1, keepdims=True))
        alpha = jnp.exp(m_prev - m_new)           # f32, tiny
        # exp in bf16 on v6e/v7x (bf16 EUP), f32 on v5e; m/l/row-sum stay f32.
        p = jnp.exp((s - m_new).astype(exp_dtype))
        l_ref[h] = alpha * l_ref[h] + jnp.sum(
            p.astype(jnp.float32), axis=-1, keepdims=True)
        acc_ref[h] = alpha * acc_ref[h] + jnp.dot(
            p.astype(v_h.dtype), v_h, preferred_element_type=jnp.float32)
        m_ref[h] = m_new

    @pl.when(ki == pl.num_programs(2) - 1)
    def _():
        inv = pl.reciprocal(l_ref[...], approx=True)              # (H, tq, 1)
        for h in range(heads):
            lo = h * dph
            o_ref[0, :, lo:lo + dph] = (acc_ref[h] * inv[h]).astype(o_ref.dtype)


def pallas_flash_attention(q, k, v, mbias, head_count, exp_dtype,
                           tq_target=512, tk_target=512):
    """q: (B, Lq, D), k/v: (B, Lk, D) bf16; mbias: (B, Lq, Lk) bf16 -> (B, Lq, D) bf16."""
    B, Lq, D = q.shape
    Lk = k.shape[1]
    dph = D // head_count
    tq = _pick_tile(Lq, tq_target, 8)
    tk = _pick_tile(Lk, tk_target, 128)
    grid = (B, Lq // tq, Lk // tk)
    kernel = partial(_flash_attn_kernel, heads=head_count, dph=dph,
                     exp_dtype=exp_dtype)
    return pl.pallas_call(
        kernel,
        grid=grid,
        in_specs=[
            pl.BlockSpec((1, tq, D), lambda b, qi, ki: (b, qi, 0)),
            pl.BlockSpec((1, tk, D), lambda b, qi, ki: (b, ki, 0)),
            pl.BlockSpec((1, tk, D), lambda b, qi, ki: (b, ki, 0)),
            pl.BlockSpec((1, tq, tk), lambda b, qi, ki: (b, qi, ki)),
        ],
        out_specs=pl.BlockSpec((1, tq, D), lambda b, qi, ki: (b, qi, 0)),
        out_shape=jax.ShapeDtypeStruct((B, Lq, D), q.dtype),
        scratch_shapes=[
            pltpu.VMEM((head_count, tq, 1), jnp.float32),     # running max m (per head)
            pltpu.VMEM((head_count, tq, 1), jnp.float32),     # running denom l (per head)
            pltpu.VMEM((head_count, tq, dph), jnp.float32),   # running context acc (per head)
        ],
        compiler_params=pltpu.CompilerParams(
            dimension_semantics=("parallel", "parallel", "arbitrary"),
            vmem_limit_bytes=_VMEM_LIMIT_BYTES,
        ),
    )(q, k, v, mbias)


# ----------------------------------------------------------------------------
# Full module forward (glue in plain JAX, hot paths in Pallas)
# ----------------------------------------------------------------------------
def multi_headed_attention_forward(params, key, value, query, mask, head_count):
    B, Lq, D = query.shape
    Lk = key.shape[1]
    H = head_count
    dph = D // H
    cdt = jnp.bfloat16
    exp_dtype = _default_exp_dtype()

    # Fold 1/sqrt(dim_per_head) query scaling into the Q projection.
    inv_sqrt_d = 1.0 / math.sqrt(dph)
    wq = (params["wq"] * inv_sqrt_d).astype(cdt)
    bq = params["bq"] * inv_sqrt_d
    wk, bk = params["wk"].astype(cdt), params["bk"]
    wv, bv = params["wv"].astype(cdt), params["bv"]
    wo, bo = params["wo"].astype(cdt), params["bo"]

    qx = query.reshape(B * Lq, D).astype(cdt)

    if (key is value) and (value is query):
        # Self-attention: fused QKV projection — activation read from HBM once.
        w_qkv = jnp.concatenate([wq, wk, wv], axis=1)          # (D, 3D)
        b_qkv = jnp.concatenate([bq, bk, bv], axis=0)          # (3D,)
        qkv = pallas_linear(qx, w_qkv, b_qkv, out_dtype=cdt)   # (B*Lq, 3D)
        q = qkv[:, :D]
        k = qkv[:, D:2 * D]
        v = qkv[:, 2 * D:]
        Lk_eff = Lq
    else:
        kx = key.reshape(B * Lk, D).astype(cdt)
        vx = value.reshape(B * Lk, D).astype(cdt)
        q = pallas_linear(qx, wq, bq, out_dtype=cdt)
        k = pallas_linear(kx, wk, bk, out_dtype=cdt)
        v = pallas_linear(vx, wv, bv, out_dtype=cdt)
        Lk_eff = Lk

    # [B*L, D] -> [B, L, D]: pure reshape, no head split/merge transposes.
    q3 = q.reshape(B, Lq, D)
    k3 = k.reshape(B, Lk_eff, D)
    v3 = v.reshape(B, Lk_eff, D)

    # additive mask bias, bf16; fetched once per (batch, q-tile, k-tile) in-kernel.
    mbias = jnp.where(mask != 0,
                      jnp.float32(_MASK_BIAS),
                      jnp.float32(0.0)).astype(cdt)

    ctx3 = pallas_flash_attention(q3, k3, v3, mbias, head_count=H,
                                  exp_dtype=exp_dtype)          # (B, Lq, D) bf16

    context = ctx3.reshape(B * Lq, D)
    out = pallas_linear(context, wo, bo, out_dtype=jnp.float32)
    return out.reshape(B, Lq, D)


# ----------------------------------------------------------------------------
# Pure-JAX f32 reference for verification
# ----------------------------------------------------------------------------
def reference_forward(params, key, value, query, mask, head_count):
    B, Lq, D = query.shape
    Lk = key.shape[1]
    dph = D // head_count
    q = query @ params["wq"] + params["bq"]
    k = key @ params["wk"] + params["bk"]
    v = value @ params["wv"] + params["bv"]

    def shape(x, L):
        return x.reshape(B, L, head_count, dph).transpose(0, 2, 1, 3)

    q4 = shape(q, Lq) / math.sqrt(dph)
    k4 = shape(k, Lk)
    v4 = shape(v, Lk)
    scores = jnp.einsum("bhqd,bhkd->bhqk", q4, k4)
    scores = jnp.where(mask[:, None, :, :] != 0, -jnp.inf, scores)
    attn = jax.nn.softmax(scores, axis=-1)
    ctx = jnp.einsum("bhqk,bhkd->bhqd", attn, v4)
    context = ctx.transpose(0, 2, 1, 3).reshape(B, Lq, D)
    return context @ params["wo"] + params["bo"]


if __name__ == "__main__":
    # Small shapes consistent with the module: batch=2, seq=8, model_dim=32, heads=4
    B, L, D, H = 2, 8, 32, 4

    root = jax.random.PRNGKey(0)
    ks = jax.random.split(root, 12)
    scale = 1.0 / math.sqrt(D)
    params = {
        "wq": jax.random.normal(ks[0], (D, D), jnp.float32) * scale,
        "bq": jax.random.normal(ks[1], (D,), jnp.float32) * 0.01,
        "wk": jax.random.normal(ks[2], (D, D), jnp.float32) * scale,
        "bk": jax.random.normal(ks[3], (D,), jnp.float32) * 0.01,
        "wv": jax.random.normal(ks[4], (D, D), jnp.float32) * scale,
        "bv": jax.random.normal(ks[5], (D,), jnp.float32) * 0.01,
        "wo": jax.random.normal(ks[6], (D, D), jnp.float32) * scale,
        "bo": jax.random.normal(ks[7], (D,), jnp.float32) * 0.01,
    }

    query = jax.random.normal(ks[8], (B, L, D), jnp.float32)
    key = jax.random.normal(ks[9], (B, L, D), jnp.float32)
    value = jax.random.normal(ks[10], (B, L, D), jnp.float32)
    # binary mask [batch, query_len, key_len]: mask out the last 2 key positions
    mask = jnp.zeros((B, L, L), jnp.int32).at[:, :, -2:].set(1)

    # Cross-attention path (distinct key/value/query): separate projections.
    out = multi_headed_attention_forward(params, key, value, query, mask, H)
    out = jax.block_until_ready(out)
    out_ref = reference_forward(params, key, value, query, mask, H)
    assert jnp.allclose(out, out_ref, atol=3e-2, rtol=3e-2), "cross-attn output mismatch"

    # Self-attention path (key is value is query): fused QKV projection.
    out_self = multi_headed_attention_forward(params, query, query, query, mask, H)
    out_self = jax.block_until_ready(out_self)
    out_self_ref = reference_forward(params, query, query, query, mask, H)
    assert jnp.allclose(out_self, out_self_ref, atol=3e-2, rtol=3e-2), \
        "self-attn (fused QKV) output mismatch"

    print("KERNEL_OK")
</pallas_src>

<mosaic_0001>
module attributes {stable_mosaic.version = 11 : i64} {
  func.func @_linear_kernel(%arg0: i32, %arg1: i32, %arg2: i32, %arg3: memref<16x32xbf16, #tpu.memory_space<vmem>>, %arg4: memref<32x32xbf16, #tpu.memory_space<vmem>>, %arg5: memref<1x32xf32, #tpu.memory_space<vmem>>, %arg6: memref<16x32xbf16, #tpu.memory_space<vmem>>, %arg7: memref<16x32xf32, #tpu.memory_space<vmem>>) attributes {dimension_semantics = [#tpu.dimension_semantics<parallel>, #tpu.dimension_semantics<parallel>, #tpu.dimension_semantics<arbitrary>], iteration_bounds = array<i64: 1, 1, 1>, scalar_prefetch = 0 : i64, scratch_operands = 1 : i64, tpu.core_type = #tpu.core_type<tc>, window_params = [{transform_indices = @transform_0, window_bounds = array<i64: 16, 32>}, {transform_indices = @transform_1, window_bounds = array<i64: 32, 32>}, {transform_indices = @transform_2, window_bounds = array<i64: 1, 32>}, {transform_indices = @transform_3, window_bounds = array<i64: 16, 32>}]} {
    %c0_i32 = arith.constant 0 : i32
    %0 = arith.cmpi eq, %arg2, %c0_i32 : i32
    %1 = arith.extui %0 : i1 to i32
    %c0_i32_0 = arith.constant 0 : i32
    %2 = arith.cmpi ne, %1, %c0_i32_0 : i32
    scf.if %2 {
      %cst_10 = arith.constant 0.000000e+00 : f32
      %12 = vector.broadcast %cst_10 : f32 to vector<16x32xf32>
      %c0_11 = arith.constant 0 : index
      %c0_12 = arith.constant 0 : index
      %13 = vector.load %arg7[%c0_11, %c0_12] : memref<16x32xf32, #tpu.memory_space<vmem>>, vector<16x32xf32>
      tpu.vector_store %arg7[%c0_11, %c0_12], %12 {strides = array<i32>} : memref<16x32xf32, #tpu.memory_space<vmem>>, vector<16x32xf32>,
    } else {
    }
    %c0 = arith.constant 0 : index
    %c0_1 = arith.constant 0 : index
    %3 = vector.load %arg7[%c0, %c0_1] : memref<16x32xf32, #tpu.memory_space<vmem>>, vector<16x32xf32>
    %c0_2 = arith.constant 0 : index
    %c0_3 = arith.constant 0 : index
    %4 = vector.load %arg3[%c0_2, %c0_3] : memref<16x32xbf16, #tpu.memory_space<vmem>>, vector<16x32xbf16>
    %c0_4 = arith.constant 0 : index
    %c0_5 = arith.constant 0 : index
    %5 = vector.load %arg4[%c0_4, %c0_5] : memref<32x32xbf16, #tpu.memory_space<vmem>>, vector<32x32xbf16>
    %cst = arith.constant dense<0.000000e+00> : vector<16x32xf32>
    %6 = tpu.matmul %4, %5, %cst {dimension_numbers = #tpu.dot_dimension_numbers<[1], [0], [0], [1], [0, 0, 1, 1], [], []>} : vector<16x32xbf16>, vector<32x32xbf16>, vector<16x32xf32> -> vector<16x32xf32>
    %7 = arith.addf %3, %6 : vector<16x32xf32>
    %c0_6 = arith.constant 0 : index
    %c0_7 = arith.constant 0 : index
    %8 = vector.load %arg7[%c0_6, %c0_7] : memref<16x32xf32, #tpu.memory_space<vmem>>, vector<16x32xf32>
    tpu.vector_store %arg7[%c0_6, %c0_7], %7 {strides = array<i32>} : memref<16x32xf32, #tpu.memory_space<vmem>>, vector<16x32xf32>,
    %c0_i32_8 = arith.constant 0 : i32
    %9 = arith.cmpi eq, %arg2, %c0_i32_8 : i32
    %10 = arith.extui %9 : i1 to i32
    %c0_i32_9 = arith.constant 0 : i32
    %11 = arith.cmpi ne, %10, %c0_i32_9 : i32
    scf.if %11 {
      %c0_10 = arith.constant 0 : index
      %c0_11 = arith.constant 0 : index
      %12 = vector.load %arg7[%c0_10, %c0_11] : memref<16x32xf32, #tpu.memory_space<vmem>>, vector<16x32xf32>
      %c0_12 = arith.constant 0 : index
      %c0_13 = arith.constant 0 : index
      %13 = vector.load %arg5[%c0_12, %c0_13] : memref<1x32xf32, #tpu.memory_space<vmem>>, vector<1x32xf32>
      %14 = vector.broadcast %13 : vector<1x32xf32> to vector<16x32xf32>
      %15 = arith.addf %12, %14 : vector<16x32xf32>
      %16 = arith.truncf %15 : vector<16x32xf32> to vector<16x32xbf16>
      %c0_14 = arith.constant 0 : index
      %c0_15 = arith.constant 0 : index
      %17 = vector.load %arg6[%c0_14, %c0_15] : memref<16x32xbf16, #tpu.memory_space<vmem>>, vector<16x32xbf16>
      tpu.vector_store %arg6[%c0_14, %c0_15], %16 {strides = array<i32>} : memref<16x32xbf16, #tpu.memory_space<vmem>>, vector<16x32xbf16>,
    } else {
    }
    return
  }
  func.func @transform_0(%arg0: i32, %arg1: i32, %arg2: i32) -> (i32, i32) {
    %c0_i32 = arith.constant 0 : i32
    return %arg0, %arg2 : i32, i32
  }
  func.func @transform_1(%arg0: i32, %arg1: i32, %arg2: i32) -> (i32, i32) {
    %c0_i32 = arith.constant 0 : i32
    return %arg2, %arg1 : i32, i32
  }
  func.func @transform_2(%arg0: i32, %arg1: i32, %arg2: i32) -> (i32, i32) {
    %c0_i32 = arith.constant 0 : i32
    %c0_i32_0 = arith.constant 0 : i32
    return %c0_i32, %arg1 : i32, i32
  }
  func.func @transform_3(%arg0: i32, %arg1: i32, %arg2: i32) -> (i32, i32) {
    %c0_i32 = arith.constant 0 : i32
    return %arg0, %arg1 : i32, i32
  }
}

</mosaic_0001>

<llo_original>
// kernel: tpu_custom_call.1
$region0: #{tpu_custom_call.1}
  #allocation0 [shape = 'u32[]', space=smem, size = 0x4, offset = 0x4, fixed_abs, tag = 'smem constant byte address 0x4 - core index']
  #allocation1 [shape = 'u32[144,128]{1,0:T(1,128)}', space=vmem, size = 0x12000, scoped, tag = 'internal scratch']
  #allocation2 [shape = 'f32[16,32]{1,0:T(8,128)}', space=vmem, size = 0x2000, scoped, tag = 'scratch operand']
  %s0 = inlined_call_operand.hbm [shape: bf16[16,32], index: 0, kind: input, shape index: {}]
  %s1 = inlined_call_operand.hbm [shape: bf16[32,32], index: 1, kind: input, shape index: {}]
  %s2 = inlined_call_operand.vmem [shape: f32[1,32], index: 2, kind: input, shape index: {}]
  %s3 = inlined_call_operand.hbm [shape: bf16[16,32], index: 3, kind: output, shape index: {}]
  %s4 = sld [smem:[#allocation0]]
  $region38: #{tpu_custom_call.1} parent=0
    _
  %s6 = ssub.s32 1, %s4
  %s7 = scalar_select 0, %s6, %s4
  $region1: #{tpu_custom_call.1} parent=0
    #allocation3 [shape = 'u8[4096]{0}', space=vmem, size = 0x1000, scoped, tag = 'input window, operand 0, single buffered']
    #allocation4 [shape = 's32[1]{0}', space=sflag, size = 0x4, scoped, tag = 'scoped memory for tpu_custom_call.1']
    #allocation5 [shape = 's32[1]{0}', space=sflag, size = 0x4, scoped, tag = 'scoped memory for tpu_custom_call.1']
    #allocation6 [shape = 'u8[8192]{0}', space=vmem, size = 0x2000, scoped, tag = 'input window, operand 1, single buffered']
    #allocation7 [shape = 's32[1]{0}', space=sflag, size = 0x4, scoped, tag = 'scoped memory for tpu_custom_call.1']
    #allocation8 [shape = 'u8[4096]{0}', space=vmem, size = 0x1000, scoped, tag = 'output window, operand 0, single buffered']
    %8 = vsyncpa [#allocation4], 0
    %9 = vsyncpa [#allocation7], 0
    %10 = vsyncpa [#allocation5], 0
    // Predicated region
    $region2: #{tpu_custom_call.1} parent=1 // pred_check
      _
    $region3: #{tpu_custom_call.1} parent=1 // pred_check_branch
      %12 = sbr.rel (0) target = $region5
    $region4: #{tpu_custom_call.1} parent=1 // pred_region
      %s14 = ssub.s32 128, 128
      %15 = vsyncadd [#allocation4], %s14
      %s16 = sshll.u32 [#allocation3], 4
      %s17 = int_to_ptr.vmem [resolvable:$true] %s16
      %22 = dma.hbm_to_vmem [thread:$0]  %s0, 128, %s17, [#allocation4], 64, 64, 4
    $region5: #{tpu_custom_call.1} parent=1 // pred_fallthru
      _
    // Predicated region
    $region6: #{tpu_custom_call.1} parent=1 // pred_check
      _
    $region7: #{tpu_custom_call.1} parent=1 // pred_check_branch
      %24 = sbr.rel (0) target = $region9
    $region8: #{tpu_custom_call.1} parent=1 // pred_region
      %s26 = ssub.s32 256, 256
      %27 = vsyncadd [#allocation7], %s26
      %s28 = sshll.u32 [#allocation6], 4
      %s29 = int_to_ptr.vmem [resolvable:$true] %s28
      %34 = dma.hbm_to_vmem [thread:$0]  %s1, 256, %s29, [#allocation7], 64, 64, 4
    $region9: #{tpu_custom_call.1} parent=1 // pred_fallthru
      _
    // Predicated region
    $region10: #{tpu_custom_call.1} parent=1 // pred_check
      _
    $region11: #{tpu_custom_call.1} parent=1 // pred_check_branch
      %36 = sbr.rel (0) target = $region13
    $region12: #{tpu_custom_call.1} parent=1 // pred_region
      _
    $region13: #{tpu_custom_call.1} parent=1 // pred_fallthru
      _
    // Predicated region
    $region14: #{tpu_custom_call.1} parent=1 // pred_check
      _
    $region15: #{tpu_custom_call.1} parent=1 // pred_check_branch
      %38 = sbr.rel (0) target = $region17
    $region16: #{tpu_custom_call.1} parent=1 // pred_region
      %39 = dma.done [#allocation4], 128
    $region17: #{tpu_custom_call.1} parent=1 // pred_fallthru
      _
    // Predicated region
    $region18: #{tpu_custom_call.1} parent=1 // pred_check
      _
    $region19: #{tpu_custom_call.1} parent=1 // pred_check_branch
      %41 = sbr.rel (0) target = $region21
    $region20: #{tpu_custom_call.1} parent=1 // pred_region
      %42 = dma.done [#allocation7], 256
    $region21: #{tpu_custom_call.1} parent=1 // pred_fallthru
      _
    %p44 = scmp.eq.s32.totalorder 0, 0
    // Predicated region
    $region22: #{tpu_custom_call.1} parent=1 // pred_check
      %p45 = pneg %p44
    $region23: #{tpu_custom_call.1} parent=1 // pred_check_branch
      %47 = sbr.rel (%p45) target = $region25
    $region24: #{tpu_custom_call.1} parent=1 // pred_region
      %vm48 = vcmask 261120
      %49 = vst.msk [vmem:[#allocation2] sm:$0xff] %vm48, 0.0
      %50 = vst.msk [vmem:[#allocation2 + $0x8] sm:$0xff] %vm48, 0.0
    $region25: #{tpu_custom_call.1} parent=1 // pred_fallthru
      _
    %v51 = vld [vmem:[#allocation2] sm:$0xff]
    %v52 = vld [vmem:[#allocation2 + $0x8] sm:$0xff]
    %v53 = vld [vmem:[#allocation3] sm:$0xf]
    %v54 = vld [vmem:[#allocation3 + $0x4] sm:$0xf]
    %v55 = vld [vmem:[#allocation6] sm:$0xf]
    %v56 = vld [vmem:[#allocation6 + $0x4] sm:$0xf]
    %v57 = vld [vmem:[#allocation6 + $0x8] sm:$0xf]
    %v58 = vld [vmem:[#allocation6 + $0xc] sm:$0xf]
    %v61 = vunpack.c.l.b16 %v53
    %v62 = vunpack.c.l.b16 %v54
    %v63 = vpack.c.b16 %v62, %v61
    %v68 = vunpack.c.l.b16 %v55
    %v69 = vunpack.c.l.b16 %v56
    %v70 = vunpack.c.l.b16 %v57
    %v71 = vunpack.c.l.b16 %v58
    %v72 = vpack.c.b16 %v69, %v68
    %v73 = vpack.c.b16 %v71, %v70
    %vm76 = vcmask 261120
    %v78 = vsel %vm76, %v63, 0
    %80 = vmatprep.subr.bf16.mxu0 0
    %81 = vmatpush1.bf16.msra.mxu0 0
    %82 = vmatprep.subr.bf16.mxu0 0
    %83 = vmatpush1.bf16.msra.mxu0 0
    %84 = vmatprep.subr.bf16.mxu0 0
    %85 = vmatpush1.bf16.msra.mxu0 0
    %86 = vmatprep.subr.bf16.mxu0 0
    %87 = vmatpush1.bf16.msra.mxu0 0
    %88 = vmatprep.subr.bf16.mxu0 0
    %89 = vmatpush1.bf16.msra.mxu0 0
    %90 = vmatprep.subr.bf16.mxu0 0
    %91 = vmatpush1.bf16.msra.mxu0 0
    %92 = vmatprep.subr.bf16.mxu0 0
    %93 = vmatpush1.bf16.msra.mxu0 %v73
    %94 = vmatprep.subr.bf16.mxu0 0
    %95 = vmatpush1.bf16.msra.mxu0 %v72
    %96 = vmatprep.subr.bf16.mxu0 0
    %97 = vmatpush2.bf16.msra.mxu0 0
    %98 = vmatprep.subr.bf16.mxu0 0
    %99 = vmatpush2.bf16.msra.mxu0 0
    %100 = vmatprep.subr.bf16.mxu0 0
    %101 = vmatpush2.bf16.msra.mxu0 0
    %102 = vmatprep.subr.bf16.mxu0 0
    %103 = vmatpush2.bf16.msra.mxu0 0
    %104 = vmatprep.subr.bf16.mxu0 0
    %105 = vmatpush2.bf16.msra.mxu0 0
    %106 = vmatprep.subr.bf16.mxu0 0
    %107 = vmatpush2.bf16.msra.mxu0 0
    %108 = vmatprep.subr.bf16.mxu0 0
    %109 = vmatpush2.bf16.msra.mxu0 0
    %110 = vmatprep.subr.bf16.mxu0 0
    %111 = vmatpush2.bf16.msra.mxu0 0
    %112 = vmatprep.mubr.bf16.mxu0 0
    %113 = vmatmul.mubr.bf16.gmra.mxu0 %v78
    %v114 = vpop.f32.mrf.mxu0
    %v115 = vadd.f32 0.0, %v114
    %v116 = vpop.f32.mrf.mxu0
    %v117 = vpop.f32.mrf.mxu0
    %v118 = vadd.f32 0.0, %v117
    %v119 = vpop.f32.mrf.mxu0
    %120 = vdwg.mxu0
    %v121 = vadd.f32 %v51, %v115
    %v122 = vadd.f32 %v52, %v118
    %123 = vst.msk [vmem:[#allocation2] sm:$0xff] %vm76, %v121
    %124 = vst.msk [vmem:[#allocation2 + $0x8] sm:$0xff] %vm76, %v122
    // Predicated region
    $region26: #{tpu_custom_call.1} parent=1 // pred_check
      %p125 = pneg %p44
    $region27: #{tpu_custom_call.1} parent=1 // pred_check_branch
      %127 = sbr.rel (%p125) target = $region29
    $region28: #{tpu_custom_call.1} parent=1 // pred_region
      %v128 = vld [vmem:[#allocation2] sm:$0xff]
      %v129 = vld [vmem:[#allocation2 + $0x8] sm:$0xff]
      %v130 = vld [vmem:[%s2] sm:$0x1]
      %v132 = vlaneseq
      %v133 = vshrl.u32 %v132, 7
      %v134 = vsub.s32 0, %v133
      %v135 = vrot.slane %v130, %v134
      %v137 = vadd.f32 %v128, %v135
      %v138 = vadd.f32 %v129, %v135
      %v139 = vpack.c.bf16 %v138, %v137
      %v141 = vunpack.c.l.b16 %v139
      %v142 = vunpack.c.h.b16 %v139
      %v143 = vpack.c.b16 %v141, %v141
      %v144 = vpack.c.b16 %v142, %v142
      %vm147 = vcmask 257024
      %148 = vst.msk [vmem:[#allocation8] sm:$0xf] %vm147, %v143
      %149 = vst.msk [vmem:[#allocation8 + $0x4] sm:$0xf] %vm147, %v144
    $region29: #{tpu_custom_call.1} parent=1 // pred_fallthru
      _
    // Predicated region
    $region30: #{tpu_custom_call.1} parent=1 // pred_check
      _
    $region31: #{tpu_custom_call.1} parent=1 // pred_check_branch
      %151 = sbr.rel (0) target = $region33
    $region32: #{tpu_custom_call.1} parent=1 // pred_region
      %s153 = ssub.s32 128, 128
      %154 = vsyncadd [#allocation5], %s153
      %s155 = sshll.u32 [#allocation8], 4
      %s156 = int_to_ptr.vmem [resolvable:$true] %s155
      %161 = dma.vmem_to_hbm [thread:$0]  %s156, 128, %s3, [#allocation5], 64, 64, 4
    $region33: #{tpu_custom_call.1} parent=1 // pred_fallthru
      _
    // Predicated region
    $region34: #{tpu_custom_call.1} parent=1 // pred_check
      _
    $region35: #{tpu_custom_call.1} parent=1 // pred_check_branch
      %163 = sbr.rel (0) target = $region37
    $region36: #{tpu_custom_call.1} parent=1 // pred_region
      %164 = dma.done [#allocation5], 128
    $region37: #{tpu_custom_call.1} parent=1 // pred_fallthru
      _
    %165 = vsyncpa [#allocation4], 1
    %166 = vsyncpa [#allocation7], 1
    %167 = vsyncpa [#allocation5], 1

</llo_original>
